<compile_context>
chip_gen: v7x
topology: tpu7x:2x2x1
jax: 0.10.0
libtpu: 0.0.40
codegen_flags: <defaults>
</compile_context>

<pallas_src>
import jax
import jax.numpy as jnp
from jax.experimental import pallas as pl
from jax.experimental.pallas import tpu as pltpu


def _round_up(x, m):
    return ((x + m - 1) // m) * m


def _actor_kernel(x_ref, w1_ref, b1_ref, gamma_ref, beta_ref, w2_ref, b2_ref,
                  out_ref):
    # Cast activations to bf16 in-kernel (free VPU op in a DMA-bound kernel).
    x = x_ref[...].astype(jnp.bfloat16)                       # [TB, S] bf16

    # ---- Linear 1 (MXU: bf16 operands, f32 accumulation) + bias + ReLU ----
    h = jnp.dot(x, w1_ref[...], preferred_element_type=jnp.float32)
    h = jnp.maximum(h + b1_ref[...], 0.0)                     # [TB, H] f32

    # ---- LayerNorm over last dim (eps=1e-5, affine), two-pass variance ----
    mean = jnp.mean(h, axis=-1, keepdims=True)
    centered = h - mean
    var = jnp.mean(centered * centered, axis=-1, keepdims=True)
    inv_std = jax.lax.rsqrt(var + 1e-5)
    hn = centered * inv_std * gamma_ref[...] + beta_ref[...]

    # ---- Linear 2 (MXU: bf16 operands, f32 accumulation) ----
    logits = jnp.dot(hn.astype(jnp.bfloat16), w2_ref[...],
                     preferred_element_type=jnp.float32)
    logits = logits + b2_ref[...]                             # padded cols: -1e30

    # ---- Softmax along features, numerically stable, exact normalization ----
    m = jnp.max(logits, axis=-1, keepdims=True)
    e = jnp.exp(logits - m)                                   # padded cols -> 0
    denom = jnp.sum(e, axis=-1, keepdims=True)
    action_dim = out_ref.shape[-1]
    # Store only the real (unpadded) action columns -> no padded HBM writeback.
    out_ref[...] = (e[:, :action_dim] / denom).astype(out_ref.dtype)


def prepare_actor_params(w1, b1, gamma, beta, w2, b2, *, lane_pad=128):
    """One-time parameter prep (bf16 cast + lane padding), outside the hot path."""
    hidden = w1.shape[1]
    action_dim = w2.shape[1]
    padded_a = _round_up(action_dim, lane_pad)

    w1_bf = w1.astype(jnp.bfloat16)
    w2_bf = w2.astype(jnp.bfloat16)
    b2_f = b2.astype(jnp.float32)
    if padded_a != action_dim:
        # Padded W2 columns are 0 and padded b2 entries are -1e30, so their
        # softmax weight underflows to exactly 0; the kernel never stores them.
        w2_bf = jnp.pad(w2_bf, ((0, 0), (0, padded_a - action_dim)))
        b2_f = jnp.pad(b2_f, ((0, padded_a - action_dim),),
                       constant_values=-1e30)

    return {
        "w1": w1_bf,                                           # [S, H] bf16
        "b1": b1.reshape(1, hidden).astype(jnp.float32),       # [1, H] f32
        "gamma": gamma.reshape(1, hidden).astype(jnp.float32), # [1, H] f32
        "beta": beta.reshape(1, hidden).astype(jnp.float32),   # [1, H] f32
        "w2": w2_bf,                                           # [H, Ap] bf16
        "b2": b2_f.reshape(1, padded_a),                       # [1, Ap] f32
        "action_dim": action_dim,
    }


def actor_forward(s, params, *, block_batch=256, core_parallel=False):
    """s: [B, ...] flattened to [B, state_dim]. Returns [B, action_dim] probs."""
    batch = s.shape[0]
    x = s.reshape(batch, -1).astype(jnp.float32)   # keep f32; cast in-kernel
    state_dim = x.shape[1]
    hidden = params["w1"].shape[1]
    padded_a = params["w2"].shape[1]
    action_dim = params["action_dim"]

    # Batch tile: multiple of 16 sublanes (bf16 packing). 256 rows keeps the
    # double-buffered working set tiny even under v7x's 64 MiB VMEM while
    # amortizing per-grid-step overhead.
    tb = min(block_batch, _round_up(batch, 16))
    tb = _round_up(tb, 16)
    padded_b = _round_up(batch, tb)
    if padded_b != batch:
        x = jnp.pad(x, ((0, padded_b - batch), (0, 0)))

    grid = (padded_b // tb,)

    def resident(shape):
        # Constant block index => tile stays resident in VMEM across grid steps.
        return pl.BlockSpec(shape, lambda i: (0,) * len(shape))

    # On v7x, core_parallel=True shards batch tiles across both TensorCores
    # (needs >= 2 grid steps to help). Plain "parallel" is safe everywhere.
    dims = (pltpu.CORE_PARALLEL,) if core_parallel else ("parallel",)

    out = pl.pallas_call(
        _actor_kernel,
        out_shape=jax.ShapeDtypeStruct((padded_b, action_dim), jnp.float32),
        grid=grid,
        in_specs=[
            pl.BlockSpec((tb, state_dim), lambda i: (i, 0)),   # x: tiled over batch
            resident((state_dim, hidden)),                     # W1
            resident((1, hidden)),                             # b1
            resident((1, hidden)),                             # gamma
            resident((1, hidden)),                             # beta
            resident((hidden, padded_a)),                      # W2 (lane-padded)
            resident((1, padded_a)),                           # b2 (lane-padded)
        ],
        out_specs=pl.BlockSpec((tb, action_dim), lambda i: (i, 0)),
        compiler_params=pltpu.CompilerParams(
            dimension_semantics=dims,
            vmem_limit_bytes=32 << 20,   # fine for v5e/v6e/v7x at these sizes
        ),
    )(x, params["w1"], params["b1"], params["gamma"], params["beta"],
      params["w2"], params["b2"])

    return out[:batch]


def init_actor_params(key, state_dim, action_dim, hidden_width):
    """Deterministic synthetic init matching nn.Linear / nn.LayerNorm shapes.

    PyTorch nn.Linear weight is [out, in]; we store the transpose [in, out].
    """
    k1, k2, k3, k4 = jax.random.split(key, 4)
    lim1 = 1.0 / jnp.sqrt(state_dim)
    lim2 = 1.0 / jnp.sqrt(hidden_width)
    w1 = jax.random.uniform(k1, (state_dim, hidden_width), jnp.float32, -lim1, lim1)
    b1 = jax.random.uniform(k2, (hidden_width,), jnp.float32, -lim1, lim1)
    w2 = jax.random.uniform(k3, (hidden_width, action_dim), jnp.float32, -lim2, lim2)
    b2 = jax.random.uniform(k4, (action_dim,), jnp.float32, -lim2, lim2)
    gamma = jnp.ones((hidden_width,), jnp.float32)   # LayerNorm weight
    beta = jnp.zeros((hidden_width,), jnp.float32)   # LayerNorm bias
    return w1, b1, gamma, beta, w2, b2


if __name__ == "__main__":
    key = jax.random.PRNGKey(0)
    k_s, k_p = jax.random.split(key)

    batch = 2
    state_dim = 16        # forward flattens s.view(B, -1); pass [B, 4, 4]
    hidden_width = 32
    action_dim = 8

    s = jax.random.normal(k_s, (batch, 4, 4), jnp.float32)
    raw_params = init_actor_params(k_p, state_dim, action_dim, hidden_width)
    w1, b1, gamma, beta, w2, b2 = raw_params

    params = prepare_actor_params(w1, b1, gamma, beta, w2, b2)

    a_prob = actor_forward(s, params)
    a_prob = jax.block_until_ready(a_prob)
    assert a_prob.shape == (batch, action_dim)

    x = s.reshape(batch, -1)

    # Reference 1: matches the kernel's precision choices (bf16 MXU operands,
    # f32 accumulation, two-pass LayerNorm) -> tight tolerance.
    h = jnp.dot(x.astype(jnp.bfloat16), w1.astype(jnp.bfloat16),
                preferred_element_type=jnp.float32) + b1
    h = jnp.maximum(h, 0.0)
    mu = h.mean(axis=-1, keepdims=True)
    c = h - mu
    var = (c * c).mean(axis=-1, keepdims=True)
    hn = c * jax.lax.rsqrt(var + 1e-5) * gamma + beta
    logits = jnp.dot(hn.astype(jnp.bfloat16), w2.astype(jnp.bfloat16),
                     preferred_element_type=jnp.float32) + b2
    ref_bf16 = jax.nn.softmax(logits, axis=1)

    # Reference 2: pure-f32 PyTorch-faithful math -> looser tolerance
    # (differences come only from deliberate bf16 matmul operands).
    hf = jnp.maximum(x @ w1 + b1, 0.0)
    muf = hf.mean(axis=-1, keepdims=True)
    varf = ((hf - muf) ** 2).mean(axis=-1, keepdims=True)
    hnf = (hf - muf) / jnp.sqrt(varf + 1e-5) * gamma + beta
    ref_f32 = jax.nn.softmax(hnf @ w2 + b2, axis=1)

    assert jnp.allclose(a_prob.sum(axis=1), 1.0, atol=1e-4)
    assert jnp.allclose(a_prob, ref_bf16, atol=2e-3, rtol=2e-3)
    assert jnp.allclose(a_prob, ref_f32, atol=2e-2, rtol=2e-2)
    print("KERNEL_OK")
</pallas_src>

<mosaic_0001>
module attributes {stable_mosaic.version = 11 : i64} {
  func.func @_actor_kernel(%arg0: i32, %arg1: memref<16x16xf32, #tpu.memory_space<vmem>>, %arg2: memref<16x32xbf16, #tpu.memory_space<vmem>>, %arg3: memref<1x32xf32, #tpu.memory_space<vmem>>, %arg4: memref<1x32xf32, #tpu.memory_space<vmem>>, %arg5: memref<1x32xf32, #tpu.memory_space<vmem>>, %arg6: memref<32x128xbf16, #tpu.memory_space<vmem>>, %arg7: memref<1x128xf32, #tpu.memory_space<vmem>>, %arg8: memref<16x8xf32, #tpu.memory_space<vmem>>) attributes {dimension_semantics = [#tpu.dimension_semantics<parallel>], iteration_bounds = array<i64: 1>, scalar_prefetch = 0 : i64, scratch_operands = 0 : i64, tpu.core_type = #tpu.core_type<tc>, window_params = [{transform_indices = @transform_0, window_bounds = array<i64: 16, 16>}, {pipeline_mode = #tpu.pipeline_mode<synchronous>, transform_indices = @transform_1, window_bounds = array<i64: 16, 32>}, {pipeline_mode = #tpu.pipeline_mode<synchronous>, transform_indices = @transform_2, window_bounds = array<i64: 1, 32>}, {pipeline_mode = #tpu.pipeline_mode<synchronous>, transform_indices = @transform_3, window_bounds = array<i64: 1, 32>}, {pipeline_mode = #tpu.pipeline_mode<synchronous>, transform_indices = @transform_4, window_bounds = array<i64: 1, 32>}, {pipeline_mode = #tpu.pipeline_mode<synchronous>, transform_indices = @transform_5, window_bounds = array<i64: 32, 128>}, {pipeline_mode = #tpu.pipeline_mode<synchronous>, transform_indices = @transform_6, window_bounds = array<i64: 1, 128>}, {transform_indices = @transform_7, window_bounds = array<i64: 16, 8>}]} {
    %c0 = arith.constant 0 : index
    %c0_0 = arith.constant 0 : index
    %0 = vector.load %arg1[%c0, %c0_0] : memref<16x16xf32, #tpu.memory_space<vmem>>, vector<16x16xf32>
    %1 = arith.truncf %0 : vector<16x16xf32> to vector<16x16xbf16>
    %c0_1 = arith.constant 0 : index
    %c0_2 = arith.constant 0 : index
    %2 = vector.load %arg2[%c0_1, %c0_2] : memref<16x32xbf16, #tpu.memory_space<vmem>>, vector<16x32xbf16>
    %cst = arith.constant dense<0.000000e+00> : vector<16x32xf32>
    %3 = tpu.matmul %1, %2, %cst {dimension_numbers = #tpu.dot_dimension_numbers<[1], [0], [0], [1], [0, 0, 1, 1], [], []>} : vector<16x16xbf16>, vector<16x32xbf16>, vector<16x32xf32> -> vector<16x32xf32>
    %c0_3 = arith.constant 0 : index
    %c0_4 = arith.constant 0 : index
    %4 = vector.load %arg3[%c0_3, %c0_4] : memref<1x32xf32, #tpu.memory_space<vmem>>, vector<1x32xf32>
    %5 = vector.broadcast %4 : vector<1x32xf32> to vector<16x32xf32>
    %6 = arith.addf %3, %5 : vector<16x32xf32>
    %cst_5 = arith.constant 0.000000e+00 : f32
    %7 = vector.broadcast %cst_5 : f32 to vector<16x32xf32>
    %8 = arith.maximumf %6, %7 : vector<16x32xf32>
    %cst_6 = arith.constant dense<0.000000e+00> : vector<16xf32>
    %9 = vector.multi_reduction <add>, %8, %cst_6 [1] : vector<16x32xf32> to vector<16xf32>
    %10 = vector.shape_cast %9 : vector<16xf32> to vector<16x1xf32>
    %cst_7 = arith.constant 3.200000e+01 : f32
    %11 = vector.broadcast %cst_7 : f32 to vector<16x1xf32>
    %12 = arith.divf %10, %11 : vector<16x1xf32>
    %13 = vector.broadcast %12 : vector<16x1xf32> to vector<16x32xf32>
    %14 = arith.subf %8, %13 : vector<16x32xf32>
    %15 = arith.mulf %14, %14 : vector<16x32xf32>
    %cst_8 = arith.constant dense<0.000000e+00> : vector<16xf32>
    %16 = vector.multi_reduction <add>, %15, %cst_8 [1] : vector<16x32xf32> to vector<16xf32>
    %17 = vector.shape_cast %16 : vector<16xf32> to vector<16x1xf32>
    %cst_9 = arith.constant 3.200000e+01 : f32
    %18 = vector.broadcast %cst_9 : f32 to vector<16x1xf32>
    %19 = arith.divf %17, %18 : vector<16x1xf32>
    %cst_10 = arith.constant 9.99999974E-6 : f32
    %20 = vector.broadcast %cst_10 : f32 to vector<16x1xf32>
    %21 = arith.addf %19, %20 : vector<16x1xf32>
    %22 = math.rsqrt %21 : vector<16x1xf32>
    %23 = vector.broadcast %22 : vector<16x1xf32> to vector<16x32xf32>
    %24 = arith.mulf %14, %23 : vector<16x32xf32>
    %c0_11 = arith.constant 0 : index
    %c0_12 = arith.constant 0 : index
    %25 = vector.load %arg4[%c0_11, %c0_12] : memref<1x32xf32, #tpu.memory_space<vmem>>, vector<1x32xf32>
    %26 = vector.broadcast %25 : vector<1x32xf32> to vector<16x32xf32>
    %27 = arith.mulf %24, %26 : vector<16x32xf32>
    %c0_13 = arith.constant 0 : index
    %c0_14 = arith.constant 0 : index
    %28 = vector.load %arg5[%c0_13, %c0_14] : memref<1x32xf32, #tpu.memory_space<vmem>>, vector<1x32xf32>
    %29 = vector.broadcast %28 : vector<1x32xf32> to vector<16x32xf32>
    %30 = arith.addf %27, %29 : vector<16x32xf32>
    %31 = arith.truncf %30 : vector<16x32xf32> to vector<16x32xbf16>
    %c0_15 = arith.constant 0 : index
    %c0_16 = arith.constant 0 : index
    %32 = vector.load %arg6[%c0_15, %c0_16] : memref<32x128xbf16, #tpu.memory_space<vmem>>, vector<32x128xbf16>
    %cst_17 = arith.constant dense<0.000000e+00> : vector<16x128xf32>
    %33 = tpu.matmul %31, %32, %cst_17 {dimension_numbers = #tpu.dot_dimension_numbers<[1], [0], [0], [1], [0, 0, 1, 1], [], []>} : vector<16x32xbf16>, vector<32x128xbf16>, vector<16x128xf32> -> vector<16x128xf32>
    %c0_18 = arith.constant 0 : index
    %c0_19 = arith.constant 0 : index
    %34 = vector.load %arg7[%c0_18, %c0_19] : memref<1x128xf32, #tpu.memory_space<vmem>>, vector<1x128xf32>
    %35 = vector.broadcast %34 : vector<1x128xf32> to vector<16x128xf32>
    %36 = arith.addf %33, %35 : vector<16x128xf32>
    %cst_20 = arith.constant dense<0xFF800000> : vector<16xf32>
    %37 = vector.multi_reduction <maximumf>, %36, %cst_20 [1] : vector<16x128xf32> to vector<16xf32>
    %38 = vector.shape_cast %37 : vector<16xf32> to vector<16x1xf32>
    %39 = vector.broadcast %38 : vector<16x1xf32> to vector<16x128xf32>
    %40 = arith.subf %36, %39 : vector<16x128xf32>
    %41 = math.exp %40 : vector<16x128xf32>
    %cst_21 = arith.constant dense<0.000000e+00> : vector<16xf32>
    %42 = vector.multi_reduction <add>, %41, %cst_21 [1] : vector<16x128xf32> to vector<16xf32>
    %43 = vector.shape_cast %42 : vector<16xf32> to vector<16x1xf32>
    %44 = vector.extract_strided_slice %41 {offsets = [0, 0], sizes = [16, 8], strides = [1, 1]} : vector<16x128xf32> to vector<16x8xf32>
    %45 = vector.broadcast %43 : vector<16x1xf32> to vector<16x8xf32>
    %46 = arith.divf %44, %45 : vector<16x8xf32>
    %c0_22 = arith.constant 0 : index
    %c0_23 = arith.constant 0 : index
    %47 = vector.load %arg8[%c0_22, %c0_23] : memref<16x8xf32, #tpu.memory_space<vmem>>, vector<16x8xf32>
    tpu.vector_store %arg8[%c0_22, %c0_23], %46 {strides = array<i32>} : memref<16x8xf32, #tpu.memory_space<vmem>>, vector<16x8xf32>,
    return
  }
  func.func @transform_0(%arg0: i32) -> (i32, i32) {
    %c0_i32 = arith.constant 0 : i32
    %c0_i32_0 = arith.constant 0 : i32
    return %arg0, %c0_i32 : i32, i32
  }
  func.func @transform_1(%arg0: i32) -> (i32, i32) {
    %c0_i32 = arith.constant 0 : i32
    %c0_i32_0 = arith.constant 0 : i32
    %c0_i32_1 = arith.constant 0 : i32
    return %c0_i32, %c0_i32_0 : i32, i32
  }
  func.func @transform_2(%arg0: i32) -> (i32, i32) {
    %c0_i32 = arith.constant 0 : i32
    %c0_i32_0 = arith.constant 0 : i32
    %c0_i32_1 = arith.constant 0 : i32
    return %c0_i32, %c0_i32_0 : i32, i32
  }
  func.func @transform_3(%arg0: i32) -> (i32, i32) {
    %c0_i32 = arith.constant 0 : i32
    %c0_i32_0 = arith.constant 0 : i32
    %c0_i32_1 = arith.constant 0 : i32
    return %c0_i32, %c0_i32_0 : i32, i32
  }
  func.func @transform_4(%arg0: i32) -> (i32, i32) {
    %c0_i32 = arith.constant 0 : i32
    %c0_i32_0 = arith.constant 0 : i32
    %c0_i32_1 = arith.constant 0 : i32
    return %c0_i32, %c0_i32_0 : i32, i32
  }
  func.func @transform_5(%arg0: i32) -> (i32, i32) {
    %c0_i32 = arith.constant 0 : i32
    %c0_i32_0 = arith.constant 0 : i32
    %c0_i32_1 = arith.constant 0 : i32
    return %c0_i32, %c0_i32_0 : i32, i32
  }
  func.func @transform_6(%arg0: i32) -> (i32, i32) {
    %c0_i32 = arith.constant 0 : i32
    %c0_i32_0 = arith.constant 0 : i32
    %c0_i32_1 = arith.constant 0 : i32
    return %c0_i32, %c0_i32_0 : i32, i32
  }
  func.func @transform_7(%arg0: i32) -> (i32, i32) {
    %c0_i32 = arith.constant 0 : i32
    %c0_i32_0 = arith.constant 0 : i32
    return %arg0, %c0_i32 : i32, i32
  }
}

</mosaic_0001>

<llo_original>
// kernel: tpu_custom_call.1
$region0: #{tpu_custom_call.1}
  #allocation0 [shape = 'u32[]', space=smem, size = 0x4, offset = 0x4, fixed_abs, tag = 'smem constant byte address 0x4 - core index']
  #allocation1 [shape = 'u32[144,128]{1,0:T(1,128)}', space=vmem, size = 0x12000, scoped, tag = 'internal scratch']
  %s0 = inlined_call_operand.hbm [shape: f32[16,16], index: 0, kind: input, shape index: {}]
  %s1 = inlined_call_operand.hbm [shape: bf16[16,32], index: 1, kind: input, shape index: {}]
  %s2 = inlined_call_operand.vmem [shape: f32[1,32], index: 2, kind: input, shape index: {}]
  %s3 = inlined_call_operand.vmem [shape: f32[1,32], index: 3, kind: input, shape index: {}]
  %s4 = inlined_call_operand.hbm [shape: f32[1,32], index: 4, kind: input, shape index: {}]
  %s5 = inlined_call_operand.vmem [shape: bf16[32,128], index: 5, kind: input, shape index: {}]
  %s6 = inlined_call_operand.vmem [shape: f32[1,128], index: 6, kind: input, shape index: {}]
  %s7 = inlined_call_operand.vmem [shape: f32[16,8], index: 7, kind: output, shape index: {}]
  %s8 = sld [smem:[#allocation0]]
  $region50: #{tpu_custom_call.1} parent=0
    _
  %s10 = ssub.s32 1, %s8
  %s11 = scalar_select 0, %s10, %s8
  $region1: #{tpu_custom_call.1} parent=0
    #allocation2 [shape = 'u8[8192]{0}', space=vmem, size = 0x2000, scoped, tag = 'input window, operand 0, single buffered']
    #allocation3 [shape = 's32[1]{0}', space=sflag, size = 0x4, scoped, tag = 'scoped memory for tpu_custom_call.1']
    #allocation4 [shape = 'u8[4096]{0}', space=vmem, size = 0x1000, scoped, tag = 'input window, operand 1, single buffered']
    #allocation5 [shape = 's32[1]{0}', space=sflag, size = 0x4, scoped, tag = 'scoped memory for tpu_custom_call.1']
    #allocation6 [shape = 'u8[512]{0}', space=vmem, size = 0x400, scoped, tag = 'input window, operand 4, single buffered']
    %12 = vsyncpa [#allocation3], 0
    %13 = vsyncpa [#allocation5], 0
    // Predicated region
    $region2: #{tpu_custom_call.1} parent=1 // pred_check
      _
    $region3: #{tpu_custom_call.1} parent=1 // pred_check_branch
      %15 = sbr.rel (0) target = $region5
    $region4: #{tpu_custom_call.1} parent=1 // pred_region
      %s17 = ssub.s32 256, 256
      %18 = vsyncadd [#allocation3], %s17
      %s19 = sshll.u32 [#allocation2], 4
      %s20 = int_to_ptr.vmem [resolvable:$true] %s19
      %25 = dma.hbm_to_vmem [thread:$0]  %s0, 256, %s20, [#allocation3], 128, 128, 8
    $region5: #{tpu_custom_call.1} parent=1 // pred_fallthru
      _
    // Predicated region
    $region6: #{tpu_custom_call.1} parent=1 // pred_check
      _
    $region7: #{tpu_custom_call.1} parent=1 // pred_check_branch
      %27 = sbr.rel (0) target = $region9
    $region8: #{tpu_custom_call.1} parent=1 // pred_region
      %s29 = ssub.s32 128, 128
      %30 = vsyncadd [#allocation5], %s29
      %s31 = sshll.u32 [#allocation4], 4
      %s32 = int_to_ptr.vmem [resolvable:$true] %s31
      %37 = dma.hbm_to_vmem [thread:$0]  %s1, 128, %s32, [#allocation5], 64, 64, 4
    $region9: #{tpu_custom_call.1} parent=1 // pred_fallthru
      _
    // Predicated region
    $region10: #{tpu_custom_call.1} parent=1 // pred_check
      _
    $region11: #{tpu_custom_call.1} parent=1 // pred_check_branch
      %39 = sbr.rel (0) target = $region13
    $region12: #{tpu_custom_call.1} parent=1 // pred_region
      _
    $region13: #{tpu_custom_call.1} parent=1 // pred_fallthru
      _
    // Predicated region
    $region14: #{tpu_custom_call.1} parent=1 // pred_check
      _
    $region15: #{tpu_custom_call.1} parent=1 // pred_check_branch
      %41 = sbr.rel (0) target = $region17
    $region16: #{tpu_custom_call.1} parent=1 // pred_region
      _
    $region17: #{tpu_custom_call.1} parent=1 // pred_fallthru
      _
    // Predicated region
    $region18: #{tpu_custom_call.1} parent=1 // pred_check
      _
    $region19: #{tpu_custom_call.1} parent=1 // pred_check_branch
      %43 = sbr.rel (0) target = $region21
    $region20: #{tpu_custom_call.1} parent=1 // pred_region
      %s45 = ssub.s32 16, 16
      %46 = vsyncadd [#allocation5], %s45
      %s48 = sshll.u32 [#allocation6], 4
      %s49 = int_to_ptr.vmem [resolvable:$true] %s48
      %51 = dma.hbm_to_vmem [thread:$0]  %s4, 16, %s49, [#allocation5]
    $region21: #{tpu_custom_call.1} parent=1 // pred_fallthru
      _
    // Predicated region
    $region22: #{tpu_custom_call.1} parent=1 // pred_check
      _
    $region23: #{tpu_custom_call.1} parent=1 // pred_check_branch
      %53 = sbr.rel (0) target = $region25
    $region24: #{tpu_custom_call.1} parent=1 // pred_region
      _
    $region25: #{tpu_custom_call.1} parent=1 // pred_fallthru
      _
    // Predicated region
    $region26: #{tpu_custom_call.1} parent=1 // pred_check
      _
    $region27: #{tpu_custom_call.1} parent=1 // pred_check_branch
      %55 = sbr.rel (0) target = $region29
    $region28: #{tpu_custom_call.1} parent=1 // pred_region
      _
    $region29: #{tpu_custom_call.1} parent=1 // pred_fallthru
      _
    // Predicated region
    $region30: #{tpu_custom_call.1} parent=1 // pred_check
      _
    $region31: #{tpu_custom_call.1} parent=1 // pred_check_branch
      %57 = sbr.rel (0) target = $region33
    $region32: #{tpu_custom_call.1} parent=1 // pred_region
      %58 = dma.done [#allocation3], 256
    $region33: #{tpu_custom_call.1} parent=1 // pred_fallthru
      _
    // Predicated region
    $region34: #{tpu_custom_call.1} parent=1 // pred_check
      _
    $region35: #{tpu_custom_call.1} parent=1 // pred_check_branch
      %60 = sbr.rel (0) target = $region37
    $region36: #{tpu_custom_call.1} parent=1 // pred_region
      %61 = dma.done [#allocation5], 128
    $region37: #{tpu_custom_call.1} parent=1 // pred_fallthru
      _
    // Predicated region
    $region38: #{tpu_custom_call.1} parent=1 // pred_check
      _
    $region39: #{tpu_custom_call.1} parent=1 // pred_check_branch
      %63 = sbr.rel (0) target = $region41
    $region40: #{tpu_custom_call.1} parent=1 // pred_region
      %64 = dma.done [#allocation5], 16
    $region41: #{tpu_custom_call.1} parent=1 // pred_fallthru
      _
    %v66 = vld [vmem:[#allocation2] sm:$0xff]
    %v67 = vld [vmem:[#allocation2 + $0x8] sm:$0xff]
    %v68 = vpack.c.bf16 %v67, %v66
    %v69 = vld [vmem:[#allocation4] sm:$0xf]
    %v70 = vld [vmem:[#allocation4 + $0x4] sm:$0xf]
    %v71 = vld [vmem:[%s2] sm:$0x1]
    %v73 = vlaneseq
    %v74 = vshrl.u32 %v73, 7
    %v75 = vsub.s32 0, %v74
    %v76 = vrot.slane %v71, %v75
    %v80 = vunpack.c.l.b16 %v69
    %v81 = vunpack.c.l.b16 %v70
    %v82 = vpack.c.b16 %v81, %v80
    %vm84 = vcmask 130048
    %v86 = vsel %vm84, %v68, 0
    %88 = vmatprep.subr.bf16.mxu0 0
    %89 = vmatpush1.bf16.msra.mxu0 %v82
    %90 = vmatprep.subr.bf16.mxu0 0
    %91 = vmatpush1.bf16.msra.mxu0 0
    %92 = vmatprep.subr.bf16.mxu0 0
    %93 = vmatpush1.bf16.msra.mxu0 0
    %94 = vmatprep.subr.bf16.mxu0 0
    %95 = vmatpush1.bf16.msra.mxu0 0
    %96 = vmatprep.subr.bf16.mxu0 0
    %97 = vmatpush1.bf16.msra.mxu0 0
    %98 = vmatprep.subr.bf16.mxu0 0
    %99 = vmatpush1.bf16.msra.mxu0 0
    %100 = vmatprep.subr.bf16.mxu0 0
    %101 = vmatpush1.bf16.msra.mxu0 0
    %102 = vmatprep.subr.bf16.mxu0 0
    %103 = vmatpush1.bf16.msra.mxu0 0
    %104 = vmatprep.subr.bf16.mxu0 0
    %105 = vmatpush1.bf16.msra.mxu0 0
    %106 = vmatprep.subr.bf16.mxu0 0
    %107 = vmatpush1.bf16.msra.mxu0 0
    %108 = vmatprep.subr.bf16.mxu0 0
    %109 = vmatpush1.bf16.msra.mxu0 0
    %110 = vmatprep.subr.bf16.mxu0 0
    %111 = vmatpush1.bf16.msra.mxu0 0
    %112 = vmatprep.subr.bf16.mxu0 0
    %113 = vmatpush1.bf16.msra.mxu0 0
    %114 = vmatprep.subr.bf16.mxu0 0
    %115 = vmatpush1.bf16.msra.mxu0 0
    %116 = vmatprep.subr.bf16.mxu0 0
    %117 = vmatpush1.bf16.msra.mxu0 0
    %118 = vmatprep.subr.bf16.mxu0 0
    %119 = vmatpush1.bf16.msra.mxu0 0
    %120 = vmatprep.mubr.bf16.mxu0 0
    %121 = vmatmul.mubr.bf16.gmra.mrb[0].mxu0 %v86
    %v122 = vpop.f32.mrb[0].mxu0
    %v123 = vadd.f32 %v76, %v122
    %v124 = vpop.f32.mrb[0].mxu0
    %v125 = vpop.f32.mrb[0].mxu0
    %v126 = vadd.f32 %v76, %v125
    %v127 = vpop.f32.mrb[0].mxu0
    %128 = vdwg.mxu0
    %v129 = vmax.f32 %v123, 0.0
    %v130 = vmax.f32 %v126, 0.0
    %vm131 = vcmask 261120
    %v132 = vsel %vm131, %v129, 0.0
    %133 = vadd.xlane.f32.xlu0 %v132
    %v134 = vpop.xlane.xlu0 %133
    %v135 = vsel %vm131, %v130, 0.0
    %136 = vadd.xlane.f32.xlu0 %v135
    %v137 = vpop.xlane.xlu0 %136
    %v138 = vrcp.pop 32.0
    %v139 = vmul.f32 %v134, %v138
    %v140 = vmul.f32 %v137, %v138
    %v141 = vsub.f32 %v129, %v139
    %v142 = vsub.f32 %v130, %v140
    %v143 = vmul.f32 %v141, %v141
    %v144 = vmul.f32 %v142, %v142
    %v145 = vsel %vm131, %v143, 0.0
    %146 = vadd.xlane.f32.xlu0 %v145
    %v147 = vpop.xlane.xlu0 %146
    %v148 = vsel %vm131, %v144, 0.0
    %149 = vadd.xlane.f32.xlu0 %v148
    %v150 = vpop.xlane.xlu0 %149
    %v151 = vmul.f32 %v147, %v138
    %v152 = vmul.f32 %v150, %v138
    %v153 = vadd.f32 %v151, 1e-05
    %v154 = vadd.f32 %v152, 1e-05
    %v155 = vrsqrt.pop %v153
    %v156 = vrsqrt.pop %v154
    %v157 = vmul.f32 %v141, %v155
    %v158 = vmul.f32 %v142, %v156
    %v159 = vld [vmem:[%s3] sm:$0x1]
    %v161 = vlaneseq
    %v162 = vshrl.u32 %v161, 7
    %v163 = vsub.s32 0, %v162
    %v164 = vrot.slane %v159, %v163
    %v166 = vmul.f32 %v157, %v164
    %v167 = vmul.f32 %v158, %v164
    %v168 = vld [vmem:[#allocation6] sm:$0x1]
    %v170 = vlaneseq
    %v171 = vshrl.u32 %v170, 7
    %v172 = vsub.s32 0, %v171
    %v173 = vrot.slane %v168, %v172
    %v175 = vadd.f32 %v166, %v173
    %v176 = vadd.f32 %v167, %v173
    %v177 = vpack.c.bf16 %v176, %v175
    %v178 = vld [vmem:[%s5] sm:$0xf]
    %v179 = vld [vmem:[%s5 + $0x4] sm:$0xf]
    %v180 = vld [vmem:[%s5 + $0x8] sm:$0xf]
    %v181 = vld [vmem:[%s5 + $0xc] sm:$0xf]
    %v182 = vld [vmem:[%s6] sm:$0x1]
    %v184 = vlaneseq
    %v185 = vshrl.u32 %v184, 7
    %v186 = vsub.s32 0, %v185
    %v187 = vrot.slane %v182, %v186
    %v193 = vunpack.c.l.b16 %v178
    %v194 = vunpack.c.l.b16 %v179
    %v195 = vunpack.c.l.b16 %v180
    %v196 = vunpack.c.l.b16 %v181
    %v197 = vpack.c.b16 %v194, %v193
    %v198 = vpack.c.b16 %v196, %v195
    %v202 = vsel %vm131, %v177, 0
    %204 = vmatprep.subr.bf16.mxu0 0
    %205 = vmatpush1.bf16.msra.mxu0 %v197
    %206 = vmatprep.subr.bf16.mxu0 0
    %207 = vmatpush1.bf16.msra.mxu0 %v198
    %208 = vmatprep.subr.bf16.mxu0 0
    %209 = vmatpush1.bf16.msra.mxu0 0
    %210 = vmatprep.subr.bf16.mxu0 0
    %211 = vmatpush1.bf16.msra.mxu0 0
    %212 = vmatprep.subr.bf16.mxu0 0
    %213 = vmatpush1.bf16.msra.mxu0 0
    %214 = vmatprep.subr.bf16.mxu0 0
    %215 = vmatpush1.bf16.msra.mxu0 0
    %216 = vmatprep.subr.bf16.mxu0 0
    %217 = vmatpush1.bf16.msra.mxu0 0
    %218 = vmatprep.subr.bf16.mxu0 0
    %219 = vmatpush1.bf16.msra.mxu0 0
    %220 = vmatprep.subr.bf16.mxu0 0
    %221 = vmatpush1.bf16.msra.mxu0 0
    %222 = vmatprep.subr.bf16.mxu0 0
    %223 = vmatpush1.bf16.msra.mxu0 0
    %224 = vmatprep.subr.bf16.mxu0 0
    %225 = vmatpush1.bf16.msra.mxu0 0
    %226 = vmatprep.subr.bf16.mxu0 0
    %227 = vmatpush1.bf16.msra.mxu0 0
    %228 = vmatprep.subr.bf16.mxu0 0
    %229 = vmatpush1.bf16.msra.mxu0 0
    %230 = vmatprep.subr.bf16.mxu0 0
    %231 = vmatpush1.bf16.msra.mxu0 0
    %232 = vmatprep.subr.bf16.mxu0 0
    %233 = vmatpush1.bf16.msra.mxu0 0
    %234 = vmatprep.subr.bf16.mxu0 0
    %235 = vmatpush1.bf16.msra.mxu0 0
    %236 = vmatprep.mubr.bf16.mxu0 0
    %237 = vmatmul.mubr.bf16.gmra.mrb[0].mxu0 %v202
    %v238 = vpop.f32.mrb[0].mxu0
    %v239 = vadd.f32 %v187, %v238
    %v240 = vpop.f32.mrb[0].mxu0
    %v241 = vpop.f32.mrb[0].mxu0
    %v242 = vadd.f32 %v187, %v241
    %v243 = vpop.f32.mrb[0].mxu0
    %244 = vdwg.mxu0
    %245 = vmax.xlane.f32.xlu0 %v239
    %v246 = vpop.xlane.xlu0 %245
    %247 = vmax.xlane.f32.xlu0 %v242
    %v248 = vpop.xlane.xlu0 %247
    %v249 = vsub.f32 %v239, %v246
    %v250 = vsub.f32 %v242, %v248
    %v251 = vmul.f32 %v249, 1.442695
    %v252 = vpow.pop %v251
    %v253 = vmul.f32 %v250, 1.442695
    %v254 = vpow.pop %v253
    %255 = vadd.xlane.f32.xlu0 %v252
    %v256 = vpop.xlane.xlu0 %255
    %257 = vadd.xlane.f32.xlu0 %v254
    %v258 = vpop.xlane.xlu0 %257
    %v259 = vrcp.pop %v256
    %v260 = vmul.f32 %v252, %v259
    %v261 = vrcp.pop %v258
    %v262 = vmul.f32 %v254, %v261
    %vm263 = vcmask 64512
    %264 = vst.msk [vmem:[%s7] sm:$0xff] %vm263, %v260
    %265 = vst.msk [vmem:[%s7 + $0x8] sm:$0xff] %vm263, %v262
    // Predicated region
    $region42: #{tpu_custom_call.1} parent=1 // pred_check
      _
    $region43: #{tpu_custom_call.1} parent=1 // pred_check_branch
      %267 = sbr.rel (0) target = $region45
    $region44: #{tpu_custom_call.1} parent=1 // pred_region
      _
    $region45: #{tpu_custom_call.1} parent=1 // pred_fallthru
      _
    // Predicated region
    $region46: #{tpu_custom_call.1} parent=1 // pred_check
      _
    $region47: #{tpu_custom_call.1} parent=1 // pred_check_branch
      %269 = sbr.rel (0) target = $region49
    $region48: #{tpu_custom_call.1} parent=1 // pred_region
      _
    $region49: #{tpu_custom_call.1} parent=1 // pred_fallthru
      _
    %270 = vsyncpa [#allocation3], 1
    %271 = vsyncpa [#allocation5], 1

</llo_original>
